<compile_context>
chip_gen: v7x
topology: tpu7x:2x2x1
jax: 0.10.0
libtpu: 0.0.40
codegen_flags: <defaults>
</compile_context>

<pallas_src>
import functools

import jax
import jax.numpy as jnp
from jax.experimental import pallas as pl
from jax.experimental.pallas import tpu as pltpu

# Augmentation hyper-parameters (from the torch module __init__).
MIN_GAMMA, MAX_GAMMA = 0.8, 1.2
MIN_BRGHT, MAX_BRGHT = 0.5, 2.0
MIN_SHIFT, MAX_SHIFT = 0.8, 1.2


def _round_up(x, m):
    return (x + m - 1) // m * m


def _vmem_budgets():
    """(per-step data-block budget, scoped vmem limit) — generation gated."""
    try:
        cap = pltpu.get_tpu_info().vmem_capacity_bytes
    except Exception:
        cap = 64 * 1024 * 1024                      # assume smallest (v7x-like)
    if cap >= 100 * 1024 * 1024:                    # v5e / v6e: 128 MiB VMEM
        return 48 * 1024 * 1024, 64 * 1024 * 1024
    return 24 * 1024 * 1024, 44 * 1024 * 1024       # v7x: 64 MiB VMEM


def _compute_dtype(data_dtype):
    """bf16 math only on parts with bf16 VPU/EUP (v6e/v7x); f32 otherwise."""
    if jnp.dtype(data_dtype) != jnp.dtype(jnp.bfloat16):
        return jnp.float32
    try:
        kind = jax.devices()[0].device_kind.lower()
    except Exception:
        return jnp.float32
    if any(tag in kind for tag in ("v2", "v3", "v4", "v5")):
        return jnp.float32                          # no bf16 VPU/EUP on v5e & older
    return jnp.bfloat16


def _choose_split(rows, hw):
    """Pick k | hw so the (rows*k, hw//k) view minimizes vreg padding
    (sublane fill to multiples of 8, lane fill to multiples of 128)."""
    best_k, best_pad = 1, None
    for k in range(1, min(64, hw) + 1):
        if hw % k:
            continue
        r, l = rows * k, hw // k
        padded = _round_up(r, 8) * _round_up(l, 128)
        if best_pad is None or padded < best_pad:
            best_k, best_pad = k, padded
    return best_k


def _choose_tiles(R, L, n_inputs, itemsize, block_budget):
    """(row_tile, hw_tile) honoring the (8,128) block rule and the VMEM budget."""
    # 2 (double buffer) * 2 (in + out) * n_inputs data blocks live per step.
    max_block_bytes = max(8 * 128 * itemsize,
                          min(4 * 1024 * 1024, block_budget // (4 * n_inputs)))
    max_elems = max_block_bytes // itemsize

    # Lane (last-dim) tile: multiple of 128 whenever possible; a ragged tail
    # block is fine for this elementwise op (Pallas masks the partial stores).
    if L <= 128:
        hw_tile = L                                  # full extent: always legal
    else:
        hw_cap = max(128, (max_elems // 8) // 128 * 128)
        hw_tile = min((L // 128) * 128, hw_cap)

    # Sublane (second-minor) tile: grow to fill the block budget.
    if R % 8 == 0:
        row_tile = min(R, max(8, (max_elems // hw_tile) // 8 * 8))
    else:
        row_tile = R                                 # full extent: always legal
        if row_tile * hw_tile > max_elems and hw_tile > 128:
            hw_tile = max(128, (max_elems // _round_up(row_tile, 8)) // 128 * 128)

    # Megacore (v7x has 2 TCs): make sure a "parallel" axis has >= 2 steps.
    if pl.cdiv(R, row_tile) * pl.cdiv(L, hw_tile) == 1:
        if hw_tile >= 256 and hw_tile % 128 == 0:
            hw_tile = max(128, _round_up(hw_tile // 2, 128))
        elif row_tile >= 16 and row_tile % 8 == 0:
            row_tile = max(8, _round_up(row_tile // 2, 8))

    return row_tile, hw_tile


def _photometric_kernel(gamma_ref, scale_ref, *refs, compute_dtype):
    """Elementwise photometric augmentation on (ROW_TILE, HW_TILE) tiles.

    gamma_ref : VMEM (ROW_TILE, 1)  per-row gamma               (float32)
    scale_ref : VMEM (ROW_TILE, 1)  per-row brightness * shift  (float32)
    refs      : n input refs followed by n output refs, each (ROW_TILE, HW_TILE)
    """
    n = len(refs) // 2
    blk = refs[n].shape
    out_dtype = refs[n].dtype
    # Hoist the lane broadcasts out of the per-input loop (JAX does not CSE
    # broadcast_in_dim, so doing this inside the loop re-emits it n times).
    g = jnp.broadcast_to(gamma_ref[...].astype(compute_dtype), blk)
    s = jnp.broadcast_to(scale_ref[...].astype(compute_dtype), blk)
    for i in range(n):                    # n = number of images: small & static
        x = refs[i][...].astype(compute_dtype)
        # x ** g as exp(g * log x): log(0) -> -inf -> exp -> 0 (== 0**g, g > 0);
        # negative x -> NaN, matching torch.pow with a fractional exponent.
        y = jnp.clip(jnp.exp(g * jnp.log(x)) * s, 0.0, 1.0)
        refs[n + i][...] = y.astype(out_dtype)


def photometric_augmentation(args, key, *, donate_inputs=False):
    """JAX/Pallas equivalent of PhotometricAugmentation.forward(*args).

    args: sequence of arrays, each (B, 3, H, W) with values in [0, 1].
    Returns (tuple of len(args) augmented arrays, (gamma, brightness, shift)).
    """
    num_splits = len(args)
    B, C, H, W = args[0].shape
    assert C == 3, "color shift assumes 3-channel (RGB) inputs, as in the torch module"
    for a in args:
        assert a.shape == (B, C, H, W) and a.dtype == args[0].dtype

    dtype = args[0].dtype
    itemsize = jnp.dtype(dtype).itemsize
    rows, hw = B * C, H * W

    # Random parameters, drawn in float32 on the host side.
    # TODO(synk): RNG stream differs from torch.rand; distribution is identical.
    k_g, k_b, k_s = jax.random.split(key, 3)
    rand_gamma = jax.random.uniform(k_g, (B,), jnp.float32) * (MAX_GAMMA - MIN_GAMMA) + MIN_GAMMA
    rand_bright = jax.random.uniform(k_b, (B,), jnp.float32) * (MAX_BRGHT - MIN_BRGHT) + MIN_BRGHT
    rand_shift = jax.random.uniform(k_s, (B, 3), jnp.float32) * (MAX_SHIFT - MIN_SHIFT) + MIN_SHIFT

    # Sublane-filling split: view every image as (B*C*k, H*W/k).
    k = _choose_split(rows, hw)
    R, L = rows * k, hw // k

    # Per-row params (row = (b*C + c)*k + j); identical for every input image
    # since the torch module tiles the same rand_shift across images.
    gamma_rows = jnp.repeat(rand_gamma, C * k).reshape(R, 1)
    scale_rows = jnp.repeat((rand_bright[:, None] * rand_shift).reshape(-1), k).reshape(R, 1)

    block_budget, vmem_limit = _vmem_budgets()
    row_tile, hw_tile = _choose_tiles(R, L, num_splits, itemsize, block_budget)
    grid = (pl.cdiv(R, row_tile), pl.cdiv(L, hw_tile))

    data_spec = pl.BlockSpec((row_tile, hw_tile), lambda r, h: (r, h))
    param_spec = pl.BlockSpec((row_tile, 1), lambda r, h: (r, 0))

    flat_inputs = [a.reshape(R, L) for a in args]     # contiguous, free reshape

    total = sum(int(a.size) for a in args)
    cost = pl.CostEstimate(
        flops=5 * total,
        transcendentals=2 * total,                    # exp + log per element
        bytes_accessed=2 * total * itemsize + 2 * R * 4,
    )

    kernel = functools.partial(_photometric_kernel,
                               compute_dtype=_compute_dtype(dtype))

    # Optional: alias image inputs to outputs when the caller donates them.
    aliases = {2 + i: i for i in range(num_splits)} if donate_inputs else {}

    outs_flat = pl.pallas_call(
        kernel,
        out_shape=tuple(jax.ShapeDtypeStruct((R, L), a.dtype) for a in args),
        grid_spec=pl.GridSpec(
            grid=grid,
            in_specs=[param_spec, param_spec] + [data_spec] * num_splits,
            out_specs=tuple(data_spec for _ in range(num_splits)),
        ),
        compiler_params=pltpu.CompilerParams(
            dimension_semantics=("parallel", "parallel"),
            vmem_limit_bytes=vmem_limit,
        ),
        cost_estimate=cost,
        input_output_aliases=aliases,
    )(gamma_rows, scale_rows, *flat_inputs)

    outs = tuple(o.reshape(B, C, H, W) for o in outs_flat)
    return outs, (rand_gamma, rand_bright, rand_shift)


def _reference(args, rand_gamma, rand_bright, rand_shift):
    """Plain-JAX reference for verification."""
    g = rand_gamma[:, None, None, None]
    br = rand_bright[:, None, None, None]
    sh = rand_shift[:, :, None, None]
    outs = []
    for a in args:
        y = jnp.clip((a.astype(jnp.float32) ** g) * br * sh, 0.0, 1.0)
        outs.append(y.astype(a.dtype))
    return tuple(outs)


if __name__ == "__main__":
    key = jax.random.PRNGKey(0)
    k_in1, k_in2, k_aug = jax.random.split(key, 3)

    # Small, module-consistent shapes: two image tensors of (B=2, C=3, H=16, W=16).
    B, C, H, W = 2, 3, 16, 16
    img1 = jax.random.uniform(k_in1, (B, C, H, W), jnp.float32)
    img2 = jax.random.uniform(k_in2, (B, C, H, W), jnp.float32)
    args = (img1, img2)

    outs, (rg, rb, rs) = photometric_augmentation(args, k_aug)
    outs = jax.block_until_ready(outs)

    refs = _reference(args, rg, rb, rs)
    for o, r in zip(outs, refs):
        assert o.shape == (B, C, H, W)
        assert jnp.allclose(o, r, atol=1e-5, rtol=1e-5)

    print("KERNEL_OK")
</pallas_src>

<mosaic_0001>
module attributes {stable_mosaic.version = 11 : i64} {
  func.func @_photometric_kernel(%arg0: i32, %arg1: i32, %arg2: memref<6x1xf32, #tpu.memory_space<vmem>>, %arg3: memref<6x1xf32, #tpu.memory_space<vmem>>, %arg4: memref<6x128xf32, #tpu.memory_space<vmem>>, %arg5: memref<6x128xf32, #tpu.memory_space<vmem>>, %arg6: memref<6x128xf32, #tpu.memory_space<vmem>>, %arg7: memref<6x128xf32, #tpu.memory_space<vmem>>) attributes {dimension_semantics = [#tpu.dimension_semantics<parallel>, #tpu.dimension_semantics<parallel>], iteration_bounds = array<i64: 1, 2>, scalar_prefetch = 0 : i64, scratch_operands = 0 : i64, tpu.core_type = #tpu.core_type<tc>, window_params = [{transform_indices = @transform_0, window_bounds = array<i64: 6, 1>}, {transform_indices = @transform_1, window_bounds = array<i64: 6, 1>}, {transform_indices = @transform_2, window_bounds = array<i64: 6, 128>}, {transform_indices = @transform_3, window_bounds = array<i64: 6, 128>}, {transform_indices = @transform_4, window_bounds = array<i64: 6, 128>}, {transform_indices = @transform_5, window_bounds = array<i64: 6, 128>}]} {
    %c0 = arith.constant 0 : index
    %c0_0 = arith.constant 0 : index
    %0 = vector.load %arg2[%c0, %c0_0] : memref<6x1xf32, #tpu.memory_space<vmem>>, vector<6x1xf32>
    %1 = vector.shape_cast %0 : vector<6x1xf32> to vector<6x1xf32>
    %2 = vector.broadcast %1 : vector<6x1xf32> to vector<6x128xf32>
    %c0_1 = arith.constant 0 : index
    %c0_2 = arith.constant 0 : index
    %3 = vector.load %arg3[%c0_1, %c0_2] : memref<6x1xf32, #tpu.memory_space<vmem>>, vector<6x1xf32>
    %4 = vector.shape_cast %3 : vector<6x1xf32> to vector<6x1xf32>
    %5 = vector.broadcast %4 : vector<6x1xf32> to vector<6x128xf32>
    %c0_3 = arith.constant 0 : index
    %c0_4 = arith.constant 0 : index
    %6 = vector.load %arg4[%c0_3, %c0_4] : memref<6x128xf32, #tpu.memory_space<vmem>>, vector<6x128xf32>
    %7 = math.log %6 : vector<6x128xf32>
    %8 = arith.mulf %2, %7 : vector<6x128xf32>
    %9 = math.exp %8 : vector<6x128xf32>
    %10 = arith.mulf %9, %5 : vector<6x128xf32>
    %cst = arith.constant 0.000000e+00 : f32
    %cst_5 = arith.constant 1.000000e+00 : f32
    %11 = vector.broadcast %cst : f32 to vector<6x128xf32>
    %12 = arith.maximumf %11, %10 : vector<6x128xf32>
    %13 = vector.broadcast %cst_5 : f32 to vector<6x128xf32>
    %14 = arith.minimumf %13, %12 : vector<6x128xf32>
    %c0_6 = arith.constant 0 : index
    %c0_7 = arith.constant 0 : index
    %15 = vector.load %arg6[%c0_6, %c0_7] : memref<6x128xf32, #tpu.memory_space<vmem>>, vector<6x128xf32>
    tpu.vector_store %arg6[%c0_6, %c0_7], %14 {strides = array<i32>} : memref<6x128xf32, #tpu.memory_space<vmem>>, vector<6x128xf32>,
    %c0_8 = arith.constant 0 : index
    %c0_9 = arith.constant 0 : index
    %16 = vector.load %arg5[%c0_8, %c0_9] : memref<6x128xf32, #tpu.memory_space<vmem>>, vector<6x128xf32>
    %17 = math.log %16 : vector<6x128xf32>
    %18 = arith.mulf %2, %17 : vector<6x128xf32>
    %19 = math.exp %18 : vector<6x128xf32>
    %20 = arith.mulf %19, %5 : vector<6x128xf32>
    %cst_10 = arith.constant 0.000000e+00 : f32
    %cst_11 = arith.constant 1.000000e+00 : f32
    %21 = vector.broadcast %cst_10 : f32 to vector<6x128xf32>
    %22 = arith.maximumf %21, %20 : vector<6x128xf32>
    %23 = vector.broadcast %cst_11 : f32 to vector<6x128xf32>
    %24 = arith.minimumf %23, %22 : vector<6x128xf32>
    %c0_12 = arith.constant 0 : index
    %c0_13 = arith.constant 0 : index
    %25 = vector.load %arg7[%c0_12, %c0_13] : memref<6x128xf32, #tpu.memory_space<vmem>>, vector<6x128xf32>
    tpu.vector_store %arg7[%c0_12, %c0_13], %24 {strides = array<i32>} : memref<6x128xf32, #tpu.memory_space<vmem>>, vector<6x128xf32>,
    return
  }
  func.func @transform_0(%arg0: i32, %arg1: i32) -> (i32, i32) {
    %c0_i32 = arith.constant 0 : i32
    %c0_i32_0 = arith.constant 0 : i32
    return %arg0, %c0_i32 : i32, i32
  }
  func.func @transform_1(%arg0: i32, %arg1: i32) -> (i32, i32) {
    %c0_i32 = arith.constant 0 : i32
    %c0_i32_0 = arith.constant 0 : i32
    return %arg0, %c0_i32 : i32, i32
  }
  func.func @transform_2(%arg0: i32, %arg1: i32) -> (i32, i32) {
    %c0_i32 = arith.constant 0 : i32
    return %arg0, %arg1 : i32, i32
  }
  func.func @transform_3(%arg0: i32, %arg1: i32) -> (i32, i32) {
    %c0_i32 = arith.constant 0 : i32
    return %arg0, %arg1 : i32, i32
  }
  func.func @transform_4(%arg0: i32, %arg1: i32) -> (i32, i32) {
    %c0_i32 = arith.constant 0 : i32
    return %arg0, %arg1 : i32, i32
  }
  func.func @transform_5(%arg0: i32, %arg1: i32) -> (i32, i32) {
    %c0_i32 = arith.constant 0 : i32
    return %arg0, %arg1 : i32, i32
  }
}

</mosaic_0001>

<llo_original>
// kernel: tpu_custom_call.1
$region0: #{tpu_custom_call.1}
  #allocation0 [shape = 'u32[]', space=smem, size = 0x4, offset = 0x4, fixed_abs, tag = 'smem constant byte address 0x4 - core index']
  #allocation1 [shape = 'u32[144,128]{1,0:T(1,128)}', space=vmem, size = 0x12000, scoped, tag = 'internal scratch']
  %s0 = inlined_call_operand.vmem [shape: f32[6,1], index: 0, kind: input, shape index: {}]
  %s1 = inlined_call_operand.vmem [shape: f32[6,1], index: 1, kind: input, shape index: {}]
  %s2 = inlined_call_operand.vmem [shape: f32[6,256], index: 2, kind: input, shape index: {}]
  %s3 = inlined_call_operand.hbm [shape: f32[6,256], index: 3, kind: input, shape index: {}]
  %s4 = inlined_call_operand.hbm [shape: f32[6,256], index: 4, kind: output, shape index: {0}]
  %s5 = inlined_call_operand.hbm [shape: f32[6,256], index: 5, kind: output, shape index: {1}]
  %6 = xla_tuple %s4, %s5
  %s7 = sld [smem:[#allocation0]]
  $region61: #{tpu_custom_call.1} parent=0
    _
  %s9 = ssub.s32 1, %s7
  %s10 = scalar_select 0, %s9, %s7
  $region1: #{tpu_custom_call.1} parent=0
    #allocation2 [shape = 'u8[8192]{0}', space=vmem, size = 0x2000, scoped, tag = 'input window, operand 3']
    #allocation3 [shape = 's32[2]{0}', space=sflag, size = 0x8, scoped, tag = 'scoped memory for tpu_custom_call.1']
    #allocation4 [shape = 's32[2]{0}', space=sflag, size = 0x8, scoped, tag = 'scoped memory for tpu_custom_call.1']
    #allocation5 [shape = 'u8[8192]{0}', space=vmem, size = 0x2000, scoped, tag = 'output window, operand 0']
    #allocation6 [shape = 'u8[8192]{0}', space=vmem, size = 0x2000, scoped, tag = 'output window, operand 1']
    #allocation7 [shape = 's32[2]{0}', space=sflag, size = 0x8, scoped, tag = 'scoped memory for tpu_custom_call.1']
    %11 = vsyncpa [#allocation3], 0
    %s12 = scalar_lea.sflag [#allocation3], 1
    %13 = vsyncpa %s12, 0
    %14 = vsyncpa [#allocation4], 0
    %s15 = scalar_lea.sflag [#allocation4], 1
    %16 = vsyncpa %s15, 0
    %17 = vsyncpa [#allocation7], 0
    %s18 = scalar_lea.sflag [#allocation7], 1
    %19 = vsyncpa %s18, 0
    loop: start=0, step=1, limit=4
    $region2: #{tpu_custom_call.1} parent=1 // loop_pre_header
      _
    $region3: #{tpu_custom_call.1} parent=1 // loop_header
      %s21 = sphi 0, %s25
      %p22 = scmp.ge.s32.totalorder %s21, 4
      %s28 = sphi 0, %s40
      %s29 = sphi 0, %s36
      %s30 = sphi 0, %s28
      %s31 = sphi 0, %s29
      %s32 = sphi 0, %s30
      %s33 = sphi 0, %s31
      %s43 = sphi 0, %s45
      %s46 = sphi 0, %s43
      %s47 = sphi 0, %s46
      %s63 = sphi 0, %s47
      %s69 = sphi 0, %s71
      %s72 = sphi 0, %s69
      %s73 = sphi 0, %s72
      %s89 = sphi 0, %s73
      %s97 = sphi 0, %s99
      %s100 = sphi 0, %s97
      %s101 = sphi 0, %s100
      %s117 = sphi 0, %s101
      %s125 = sphi 0, %s127
      %s128 = sphi 0, %s125
      %s129 = sphi 0, %s128
      %s145 = sphi 0, %s129
      %s153 = sphi 0, %s155
      %s156 = sphi 0, %s153
      %s157 = sphi 0, %s156
      %s173 = sphi 0, %s157
      %s181 = sphi 0, %s183
      %s184 = sphi 0, %s181
      %s185 = sphi 0, %s184
      %s201 = sphi 0, %s185
    $region4: #{tpu_custom_call.1} parent=1 // loop_header_branch
      %24 = sbr.rel (%p22) target = $region8
    $region5: #{tpu_custom_call.1} parent=1 // loop_body
      %s26 = ssub.s32 %s21, 1
      %s27 = ssub.s32 %s21, 2
      %s34 = sadd.s32 1, %s29
      %p35 = scmp.ge.s32.totalorder %s34, 2
      %s36 = scalar_select %p35, 0, %s34
      %s37 = sadd.s32 1, %s28
      %s38 = scalar_select %p35, %s37, %s28
      %p39 = scmp.ge.s32.totalorder %s38, 1
      %s40 = scalar_select %p39, 0, %s38
      %s41 = ssub.s32 %s28, %s40
      %p42 = scmp.eq.s32.totalorder %s41, 0
      %s44 = sadd.s32 %s43, 1
      %s45 = scalar_select %p42, %s43, %s44
      %p48 = pneg %p42
      %p49 = scmp.eq.s32.totalorder %s21, 1
      %p50 = por %p48, %p49
      %p51 = scmp.ne.s32.totalorder %s43, %s46
      %p52 = scmp.eq.s32.totalorder %s21, 0
      %p53 = por %p51, %p52
      %p54 = scmp.ne.s32.totalorder %s43, %s46
      %p55 = scmp.eq.s32.totalorder %s26, 1
      %p56 = por %p54, %p55
      %p57 = scmp.ne.s32.totalorder %s46, %s47
      %p58 = scmp.eq.s32.totalorder %s26, 0
      %p59 = por %p57, %p58
      %p60 = scmp.ne.s32.totalorder %s46, %s47
      %p61 = scmp.eq.s32.totalorder %s27, 1
      %p62 = por %p60, %p61
      %p64 = scmp.ne.s32.totalorder %s47, %s63
      %p65 = scmp.eq.s32.totalorder %s27, 0
      %p66 = por %p64, %p65
      %s67 = ssub.s32 %s28, %s40
      %p68 = scmp.eq.s32.totalorder %s67, 0
      %s70 = sadd.s32 %s69, 1
      %s71 = scalar_select %p68, %s69, %s70
      %p74 = pneg %p68
      %p75 = scmp.eq.s32.totalorder %s21, 1
      %p76 = por %p74, %p75
      %p77 = scmp.ne.s32.totalorder %s69, %s72
      %p78 = scmp.eq.s32.totalorder %s21, 0
      %p79 = por %p77, %p78
      %p80 = scmp.ne.s32.totalorder %s69, %s72
      %p81 = scmp.eq.s32.totalorder %s26, 1
      %p82 = por %p80, %p81
      %p83 = scmp.ne.s32.totalorder %s72, %s73
      %p84 = scmp.eq.s32.totalorder %s26, 0
      %p85 = por %p83, %p84
      %p86 = scmp.ne.s32.totalorder %s72, %s73
      %p87 = scmp.eq.s32.totalorder %s27, 1
      %p88 = por %p86, %p87
      %p90 = scmp.ne.s32.totalorder %s73, %s89
      %p91 = scmp.eq.s32.totalorder %s27, 0
      %p92 = por %p90, %p91
      %s93 = ssub.s32 %s28, %s40
      %s94 = ssub.s32 %s29, %s36
      %s95 = sor.u32 %s93, %s94
      %p96 = scmp.eq.s32.totalorder %s95, 0
      %s98 = sadd.s32 %s97, 1
      %s99 = scalar_select %p96, %s97, %s98
      %p102 = pneg %p96
      %p103 = scmp.eq.s32.totalorder %s21, 1
      %p104 = por %p102, %p103
      %p105 = scmp.ne.s32.totalorder %s97, %s100
      %p106 = scmp.eq.s32.totalorder %s21, 0
      %p107 = por %p105, %p106
      %p108 = scmp.ne.s32.totalorder %s97, %s100
      %p109 = scmp.eq.s32.totalorder %s26, 1
      %p110 = por %p108, %p109
      %p111 = scmp.ne.s32.totalorder %s100, %s101
      %p112 = scmp.eq.s32.totalorder %s26, 0
      %p113 = por %p111, %p112
      %p114 = scmp.ne.s32.totalorder %s100, %s101
      %p115 = scmp.eq.s32.totalorder %s27, 1
      %p116 = por %p114, %p115
      %p118 = scmp.ne.s32.totalorder %s101, %s117
      %p119 = scmp.eq.s32.totalorder %s27, 0
      %p120 = por %p118, %p119
      %s121 = ssub.s32 %s28, %s40
      %s122 = ssub.s32 %s29, %s36
      %s123 = sor.u32 %s121, %s122
      %p124 = scmp.eq.s32.totalorder %s123, 0
      %s126 = sadd.s32 %s125, 1
      %s127 = scalar_select %p124, %s125, %s126
      %p130 = pneg %p124
      %p131 = scmp.eq.s32.totalorder %s21, 1
      %p132 = por %p130, %p131
      %p133 = scmp.ne.s32.totalorder %s125, %s128
      %p134 = scmp.eq.s32.totalorder %s21, 0
      %p135 = por %p133, %p134
      %p136 = scmp.ne.s32.totalorder %s125, %s128
      %p137 = scmp.eq.s32.totalorder %s26, 1
      %p138 = por %p136, %p137
      %p139 = scmp.ne.s32.totalorder %s128, %s129
      %p140 = scmp.eq.s32.totalorder %s26, 0
      %p141 = por %p139, %p140
      %p142 = scmp.ne.s32.totalorder %s128, %s129
      %p143 = scmp.eq.s32.totalorder %s27, 1
      %p144 = por %p142, %p143
      %p146 = scmp.ne.s32.totalorder %s129, %s145
      %p147 = scmp.eq.s32.totalorder %s27, 0
      %p148 = por %p146, %p147
      %s149 = ssub.s32 %s28, %s40
      %s150 = ssub.s32 %s29, %s36
      %s151 = sor.u32 %s149, %s150
      %p152 = scmp.eq.s32.totalorder %s151, 0
      %s154 = sadd.s32 %s153, 1
      %s155 = scalar_select %p152, %s153, %s154
      %p158 = pneg %p152
      %p159 = scmp.eq.s32.totalorder %s21, 1
      %p160 = por %p158, %p159
      %p161 = scmp.ne.s32.totalorder %s153, %s156
      %p162 = scmp.eq.s32.totalorder %s21, 0
      %p163 = por %p161, %p162
      %p164 = scmp.ne.s32.totalorder %s153, %s156
      %p165 = scmp.eq.s32.totalorder %s26, 1
      %p166 = por %p164, %p165
      %p167 = scmp.ne.s32.totalorder %s156, %s157
      %p168 = scmp.eq.s32.totalorder %s26, 0
      %p169 = por %p167, %p168
      %p170 = scmp.ne.s32.totalorder %s156, %s157
      %p171 = scmp.eq.s32.totalorder %s27, 1
      %p172 = por %p170, %p171
      %p174 = scmp.ne.s32.totalorder %s157, %s173
      %p175 = scmp.eq.s32.totalorder %s27, 0
      %p176 = por %p174, %p175
      %s177 = ssub.s32 %s28, %s40
      %s178 = ssub.s32 %s29, %s36
      %s179 = sor.u32 %s177, %s178
      %p180 = scmp.eq.s32.totalorder %s179, 0
      %s182 = sadd.s32 %s181, 1
      %s183 = scalar_select %p180, %s181, %s182
      %p186 = pneg %p180
      %p187 = scmp.eq.s32.totalorder %s21, 1
      %p188 = por %p186, %p187
      %p189 = scmp.ne.s32.totalorder %s181, %s184
      %p190 = scmp.eq.s32.totalorder %s21, 0
      %p191 = por %p189, %p190
      %p192 = scmp.ne.s32.totalorder %s181, %s184
      %p193 = scmp.eq.s32.totalorder %s26, 1
      %p194 = por %p192, %p193
      %p195 = scmp.ne.s32.totalorder %s184, %s185
      %p196 = scmp.eq.s32.totalorder %s26, 0
      %p197 = por %p195, %p196
      %p198 = scmp.ne.s32.totalorder %s184, %s185
      %p199 = scmp.eq.s32.totalorder %s27, 1
      %p200 = por %p198, %p199
      %p202 = scmp.ne.s32.totalorder %s185, %s201
      %p203 = scmp.eq.s32.totalorder %s27, 0
      %p204 = por %p202, %p203
      %p205 = scmp.le.s32.totalorder 1, %s21
      %p206 = scmp.lt.s32.totalorder %s21, 3
      %p207 = pnand %p205, %p206
      %p208 = pneg %p207
      // Predicated region
      $region9: #{tpu_custom_call.1} parent=5 // pred_check
        _
      $region10: #{tpu_custom_call.1} parent=5 // pred_check_branch
        %210 = sbr.rel (%p207) target = $region12
      $region11: #{tpu_custom_call.1} parent=5 // pred_region
        %s211 = ssub.s32 %s21, 1
        // Predicated region
        $region13: #{tpu_custom_call.1} parent=11 // pred_check
          %p212 = pneg %p59
        $region14: #{tpu_custom_call.1} parent=11 // pred_check_branch
          %214 = sbr.rel (%p212) target = $region16
        $region15: #{tpu_custom_call.1} parent=11 // pred_region
          %p215 = scmp.lt.s32.totalorder %s30, 0
          %s216 = scalar_select %p215, %s30, 0
          %s217 = smul.addr %s216, 8
          %s218 = scalar_lea.vmem %s0, %s217
        $region16: #{tpu_custom_call.1} parent=11 // pred_fallthru
          _
        // Predicated region
        $region17: #{tpu_custom_call.1} parent=11 // pred_check
          %p219 = pneg %p85
        $region18: #{tpu_custom_call.1} parent=11 // pred_check_branch
          %221 = sbr.rel (%p219) target = $region20
        $region19: #{tpu_custom_call.1} parent=11 // pred_region
          %p222 = scmp.lt.s32.totalorder %s30, 0
          %s223 = scalar_select %p222, %s30, 0
          %s224 = smul.addr %s223, 8
          %s225 = scalar_lea.vmem %s1, %s224
        $region20: #{tpu_custom_call.1} parent=11 // pred_fallthru
          _
      $region12: #{tpu_custom_call.1} parent=5 // pred_fallthru
        _
      %p226 = scmp.lt.s32.totalorder %s21, 2
      // Predicated region
      $region21: #{tpu_custom_call.1} parent=5 // pred_check
        %p227 = pneg %p226
      $region22: #{tpu_custom_call.1} parent=5 // pred_check_branch
        %229 = sbr.rel (%p227) target = $region24
      $region23: #{tpu_custom_call.1} parent=5 // pred_region
        // Predicated region
        $region25: #{tpu_custom_call.1} parent=23 // pred_check
          %p230 = pneg %p107
        $region26: #{tpu_custom_call.1} parent=23 // pred_check_branch
          %232 = sbr.rel (%p230) target = $region28
        $region27: #{tpu_custom_call.1} parent=23 // pred_region
          %p233 = scmp.lt.s32.totalorder %s28, 0
          %s234 = scalar_select %p233, %s28, 0
          %p235 = scmp.lt.s32.totalorder %s29, 1
          %s236 = scalar_select %p235, %s29, 1
          %s237 = smul.addr %s234, 2
          %s238 = sadd.s32 %s236, %s237
          %s239 = smul.addr %s238, 8
          %s240 = scalar_lea.vmem %s2, %s239
        $region28: #{tpu_custom_call.1} parent=23 // pred_fallthru
          _
        // Predicated region
        $region29: #{tpu_custom_call.1} parent=23 // pred_check
          %p241 = pneg %p135
        $region30: #{tpu_custom_call.1} parent=23 // pred_check_branch
          %243 = sbr.rel (%p241) target = $region32
        $region31: #{tpu_custom_call.1} parent=23 // pred_region
          %s244 = sand.u32 %s125, 1
          %s245 = scalar_lea.sflag [#allocation3], %s244
          %s246 = sand.u32 %s125, 1
          %s247 = smul.addr %s246, 8
          %s248 = scalar_lea.vmem [#allocation2], %s247
          %s250 = ssub.s32 128, 128
          %251 = vsyncadd %s245, %s250
          %s252 = smul.addr %s28, 2
          %s253 = sadd.s32 %s29, %s252
          %s254 = smul.addr %s253, 128
          %s255 = scalar_lea.hbm %s3, %s254
          %s257 = sshll.u32 %s248, 4
          %s258 = int_to_ptr.vmem [resolvable:$true] %s257
          %260 = dma.hbm_to_vmem [thread:$0]  %s255, 128, %s258, %s245
        $region32: #{tpu_custom_call.1} parent=23 // pred_fallthru
          _
      $region24: #{tpu_custom_call.1} parent=5 // pred_fallthru
        _
      %p261 = scmp.le.s32.totalorder 1, %s21
      %p262 = scmp.lt.s32.totalorder %s21, 3
      %p263 = pnand %p261, %p262
      %p264 = pneg %p263
      // Predicated region
      $region33: #{tpu_custom_call.1} parent=5 // pred_check
        _
      $region34: #{tpu_custom_call.1} parent=5 // pred_check_branch
        %266 = sbr.rel (%p263) target = $region36
      $region35: #{tpu_custom_call.1} parent=5 // pred_region
        %s267 = ssub.s32 %s21, 1
        %s268 = sand.u32 %s128, 1
        %s269 = scalar_lea.sflag [#allocation3], %s268
        %s270 = sand.u32 %s128, 1
        %s271 = smul.addr %s270, 8
        %s272 = scalar_lea.vmem [#allocation2], %s271
        // Predicated region
        $region37: #{tpu_custom_call.1} parent=35 // pred_check
          %p273 = pneg %p141
        $region38: #{tpu_custom_call.1} parent=35 // pred_check_branch
          %275 = sbr.rel (%p273) target = $region40
        $region39: #{tpu_custom_call.1} parent=35 // pred_region
          %276 = dma.done %s269, 128
        $region40: #{tpu_custom_call.1} parent=35 // pred_fallthru
          _
        %p277 = scmp.lt.s32.totalorder %s30, 0
        %s278 = scalar_select %p277, %s30, 0
        %s279 = smul.addr %s278, 8
        %s280 = scalar_lea.vmem %s0, %s279
        %p281 = pneg %p59
        %p282 = pneg %p56
        %p283 = scmp.lt.s32.totalorder %s30, 0
        %s284 = scalar_select %p283, %s30, 0
        %s285 = smul.addr %s284, 8
        %s286 = scalar_lea.vmem %s1, %s285
        %p287 = pneg %p85
        %p288 = pneg %p82
        %p289 = scmp.lt.s32.totalorder %s30, 0
        %s290 = scalar_select %p289, %s30, 0
        %p291 = scmp.lt.s32.totalorder %s31, 1
        %s292 = scalar_select %p291, %s31, 1
        %s293 = smul.addr %s290, 2
        %s294 = sadd.s32 %s292, %s293
        %s295 = smul.addr %s294, 8
        %s296 = scalar_lea.vmem %s2, %s295
        %p297 = pneg %p113
        %p298 = pneg %p110
        %s299 = sand.u32 %s128, 1
        %s300 = scalar_lea.sflag [#allocation3], %s299
        %s301 = sand.u32 %s128, 1
        %s302 = smul.addr %s301, 8
        %s303 = scalar_lea.vmem [#allocation2], %s302
        %p304 = pneg %p141
        %p305 = pneg %p138
        %p306 = pneg %p169
        %p307 = pneg %p166
        %s308 = sand.u32 %s156, 1
        %s309 = scalar_lea.sflag [#allocation4], %s308
        %s310 = sand.u32 %s156, 1
        %s311 = smul.addr %s310, 8
        %s312 = scalar_lea.vmem [#allocation5], %s311
        %p313 = pneg %p197
        %p314 = pneg %p194
        %s315 = sand.u32 %s184, 1
        %s316 = scalar_lea.sflag [#allocation7], %s315
        %s317 = sand.u32 %s184, 1
        %s318 = smul.addr %s317, 8
        %s319 = scalar_lea.vmem [#allocation6], %s318
        %p320 = scmp.lt.s32.totalorder %s30, 0
        %s321 = scalar_select %p320, %s30, 0
        %s322 = smul.addr %s321, 8
        %s323 = scalar_lea.vmem %s0, %s322
        %p324 = scmp.lt.s32.totalorder %s30, 0
        %s325 = scalar_select %p324, %s30, 0
        %s326 = smul.addr %s325, 8
        %s327 = scalar_lea.vmem %s1, %s326
        %p328 = scmp.lt.s32.totalorder %s30, 0
        %s329 = scalar_select %p328, %s30, 0
        %p330 = scmp.lt.s32.totalorder %s31, 1
        %s331 = scalar_select %p330, %s31, 1
        %s332 = smul.addr %s329, 2
        %s333 = sadd.s32 %s331, %s332
        %s334 = smul.addr %s333, 8
        %s335 = scalar_lea.vmem %s2, %s334
        %v336 = vld [vmem:[%s323] sm:$0x3f]
        %338 = vset.pattern.permute.xlu0 0
        %339 = vperm.xlu0 %338, %v336
        %v340 = vpop.permute.xlu0 %339
        %v342 = vld [vmem:[%s327] sm:$0x3f]
        %344 = vset.pattern.permute.xlu0 0
        %345 = vperm.xlu0 %344, %v342
        %v346 = vpop.permute.xlu0 %345
        %v348 = vld [vmem:[%s335] sm:$0x3f]
        %v349 = vlog2.pop %v348
        %v350 = vmul.f32 %v349, 0.6931472
        %v351 = vmul.f32 %v340, %v350
        %v352 = vmul.f32 %v351, 1.442695
        %v353 = vpow.pop %v352
        %v354 = vmul.f32 %v353, %v346
        %v355 = vmax.f32 %v354, 0.0
        %v356 = vmin.f32 %v355, 1.0
        %357 = vst [vmem:[%s312] sm:$0x3f] %v356
        %v358 = vld [vmem:[%s272] sm:$0x3f]
        %v359 = vlog2.pop %v358
        %v360 = vmul.f32 %v359, 0.6931472
        %v361 = vmul.f32 %v340, %v360
        %v362 = vmul.f32 %v361, 1.442695
        %v363 = vpow.pop %v362
        %v364 = vmul.f32 %v363, %v346
        %v365 = vmax.f32 %v364, 0.0
        %v366 = vmin.f32 %v365, 1.0
        %367 = vst [vmem:[%s319] sm:$0x3f] %v366
        %s368 = sand.u32 %s156, 1
        %s369 = scalar_lea.sflag [#allocation4], %s368
        %s370 = sand.u32 %s156, 1
        %s371 = smul.addr %s370, 8
        %s372 = scalar_lea.vmem [#allocation5], %s371
        %s373 = sand.u32 %s184, 1
        %s374 = scalar_lea.sflag [#allocation7], %s373
        %s375 = sand.u32 %s184, 1
        %s376 = smul.addr %s375, 8
        %s377 = scalar_lea.vmem [#allocation6], %s376
        // Predicated region
        $region41: #{tpu_custom_call.1} parent=35 // pred_check
          %p378 = pneg %p166
        $region42: #{tpu_custom_call.1} parent=35 // pred_check_branch
          %380 = sbr.rel (%p378) target = $region44
        $region43: #{tpu_custom_call.1} parent=35 // pred_region
          %s382 = ssub.s32 128, 128
          %383 = vsyncadd %s369, %s382
          %s384 = smul.addr %s30, 2
          %s385 = sadd.s32 %s31, %s384
          %s386 = smul.addr %s385, 128
          %s387 = scalar_lea.hbm %s4, %s386
          %s389 = sshll.u32 %s372, 4
          %s390 = int_to_ptr.vmem [resolvable:$true] %s389
          %392 = dma.vmem_to_hbm [thread:$0]  %s390, 128, %s387, %s369
        $region44: #{tpu_custom_call.1} parent=35 // pred_fallthru
          _
        // Predicated region
        $region45: #{tpu_custom_call.1} parent=35 // pred_check
          %p393 = pneg %p194
        $region46: #{tpu_custom_call.1} parent=35 // pred_check_branch
          %395 = sbr.rel (%p393) target = $region48
        $region47: #{tpu_custom_call.1} parent=35 // pred_region
          %s397 = ssub.s32 128, 128
          %398 = vsyncadd %s374, %s397
          %s399 = smul.addr %s30, 2
          %s400 = sadd.s32 %s31, %s399
          %s401 = smul.addr %s400, 128
          %s402 = scalar_lea.hbm %s5, %s401
          %s404 = sshll.u32 %s377, 4
          %s405 = int_to_ptr.vmem [resolvable:$true] %s404
          %407 = dma.vmem_to_hbm [thread:$0]  %s405, 128, %s402, %s374
        $region48: #{tpu_custom_call.1} parent=35 // pred_fallthru
          _
      $region36: #{tpu_custom_call.1} parent=5 // pred_fallthru
        _
      %p408 = scmp.le.s32.totalorder 2, %s21
      // Predicated region
      $region49: #{tpu_custom_call.1} parent=5 // pred_check
        %p409 = pneg %p408
      $region50: #{tpu_custom_call.1} parent=5 // pred_check_branch
        %411 = sbr.rel (%p409) target = $region52
      $region51: #{tpu_custom_call.1} parent=5 // pred_region
        %s412 = ssub.s32 %s21, 2
        // Predicated region
        $region53: #{tpu_custom_call.1} parent=51 // pred_check
          %p413 = pneg %p172
        $region54: #{tpu_custom_call.1} parent=51 // pred_check_branch
          %415 = sbr.rel (%p413) target = $region56
        $region55: #{tpu_custom_call.1} parent=51 // pred_region
          %s416 = sand.u32 %s157, 1
          %s417 = scalar_lea.sflag [#allocation4], %s416
          %s418 = sand.u32 %s157, 1
          %s419 = smul.addr %s418, 8
          %s420 = scalar_lea.vmem [#allocation5], %s419
          %421 = dma.done %s417, 128
        $region56: #{tpu_custom_call.1} parent=51 // pred_fallthru
          _
        // Predicated region
        $region57: #{tpu_custom_call.1} parent=51 // pred_check
          %p422 = pneg %p200
        $region58: #{tpu_custom_call.1} parent=51 // pred_check_branch
          %424 = sbr.rel (%p422) target = $region60
        $region59: #{tpu_custom_call.1} parent=51 // pred_region
          %s425 = sand.u32 %s185, 1
          %s426 = scalar_lea.sflag [#allocation7], %s425
          %s427 = sand.u32 %s185, 1
          %s428 = smul.addr %s427, 8
          %s429 = scalar_lea.vmem [#allocation6], %s428
          %430 = dma.done %s426, 128
        $region60: #{tpu_custom_call.1} parent=51 // pred_fallthru
          _
      $region52: #{tpu_custom_call.1} parent=5 // pred_fallthru
        _
    $region6: #{tpu_custom_call.1} parent=1 // loop_footer
      %s25 = sadd.s32 1, %s21
    $region7: #{tpu_custom_call.1} parent=1 // loop_footer_branch
      %20 = sbr.rel target = $region3
    $region8: #{tpu_custom_call.1} parent=1 // loop_exit
      _
    %431 = vsyncpa [#allocation3], 1
    %s432 = scalar_lea.sflag [#allocation3], 1
    %433 = vsyncpa %s432, 1
    %434 = vsyncpa [#allocation4], 1
    %s435 = scalar_lea.sflag [#allocation4], 1
    %436 = vsyncpa %s435, 1
    %437 = vsyncpa [#allocation7], 1
    %s438 = scalar_lea.sflag [#allocation7], 1
    %439 = vsyncpa %s438, 1

</llo_original>
